<compile_context>
chip_gen: v7x
topology: tpu7x:2x2x1
jax: 0.10.0
libtpu: 0.0.40
codegen_flags: <defaults>
</compile_context>

<pallas_src>
import jax
import jax.numpy as jnp
from jax import lax
from jax.experimental import pallas as pl
from jax.experimental.pallas import tpu as pltpu

LANE = 128
SUBLANE = 8
NEG_INF = -1e30

# Table-resident fast-path budgets.  v7x has 64 MiB VMEM (half of v5e/v6e), so
# keep table + counts + double-buffered tiles comfortably under ~40 MiB.
_TABLE_VMEM_BUDGET = 8 * 1024 * 1024    # embedding-table bytes allowed in VMEM
_COUNTS_VMEM_BUDGET = 8 * 1024 * 1024   # in-kernel (TB, V_pad) f32 counts
_VMEM_LIMIT_BYTES = 40 * 1024 * 1024


def _round_up(x, m):
    return (x + m - 1) // m * m


# ---------------------------------------------------------------------------
# Shared MLP tail: fc1 (1/S folded into w1) -> relu -> fc2 -> log_softmax.
# All accumulation / softmax math is f32; activations are cast to the weight
# dtype (bf16 or f32) right before each MXU dot.
# ---------------------------------------------------------------------------
def _mlp_log_softmax(pooled_sum, w1_ref, b1_ref, w2_ref, b2_ref, out_ref):
    h = jnp.dot(pooled_sum.astype(w1_ref.dtype), w1_ref[...],
                preferred_element_type=jnp.float32) + b1_ref[...]
    h = jnp.maximum(h, 0.0)
    # TODO(synk): training-mode dropout (p=0.4) omitted; eval/inference
    # (identity) semantics are implemented.
    logits = jnp.dot(h.astype(w2_ref.dtype), w2_ref[...],
                     preferred_element_type=jnp.float32) + b2_ref[...]
    m = jnp.max(logits, axis=-1, keepdims=True)
    z = logits - m
    lse = jnp.log(jnp.sum(jnp.exp(z), axis=-1, keepdims=True))
    out_ref[...] = (z - lse).astype(out_ref.dtype)


# ---------------------------------------------------------------------------
# Fused fast-path kernel (table resident in VMEM).
# grid = (num_batch_tiles,).  Per TB-row tile: build a (TB, V_pad) token-count
# matrix with VPU compares, pool with one MXU matmul against the table, then
# run the MLP tail and do a single lane-dense store.
# ---------------------------------------------------------------------------
def _fused_dan_kernel(ids_ref, emb_ref, w1_ref, b1_ref, w2_ref, b2_ref,
                      out_ref):
    tb, seq = ids_ref.shape
    v_pad = emb_ref.shape[0]
    ids = ids_ref[...]                                          # (TB, S) int32
    iota_v = lax.broadcasted_iota(jnp.int32, (1, v_pad), 1)     # (1, V_pad)
    counts = jnp.zeros((tb, v_pad), jnp.float32)
    # seq is a static shape -> unrolled VPU compare-adds; working set stays
    # (TB, V_pad) instead of a (TB, S, V) one-hot.
    for s in range(seq):
        tok = lax.slice_in_dim(ids, s, s + 1, axis=1)           # (TB, 1)
        counts = counts + (tok == iota_v).astype(jnp.float32)
    # Pooled SUM over the sequence (1/S folded into w1): one MXU matmul
    # against the VMEM-resident table instead of per-token row DMAs.
    pooled_sum = jnp.dot(counts.astype(emb_ref.dtype), emb_ref[...],
                         preferred_element_type=jnp.float32)
    _mlp_log_softmax(pooled_sum, w1_ref, b1_ref, w2_ref, b2_ref, out_ref)


# ---------------------------------------------------------------------------
# Large-vocab fallback (table does not fit VMEM): stage 1 gathers one table
# row per (b, s) grid step via a scalar-prefetch-driven BlockSpec (Buffered(8)
# keeps several row DMAs in flight); stage 2 is the batch-tiled MLP tail.
# ---------------------------------------------------------------------------
def _gather_pool_kernel(idx_ref, emb_row_ref, pooled_ref):
    del idx_ref  # consumed only by the index_maps

    @pl.when(pl.program_id(1) == 0)
    def _():
        pooled_ref[...] = jnp.zeros_like(pooled_ref)

    pooled_ref[...] += emb_row_ref[...].astype(pooled_ref.dtype)


def _mlp_kernel(pooled_ref, w1_ref, b1_ref, w2_ref, b2_ref, out_ref):
    _mlp_log_softmax(pooled_ref[...], w1_ref, b1_ref, w2_ref, b2_ref, out_ref)


def _gather_pool(idx_p, emb_p, *, gather_buffers=8):
    B_pad, S = idx_p.shape
    _, E_pad = emb_p.shape
    # TODO(synk): for very large vocabs the real fix is a manual batched
    # make_async_copy gather (many rows per grid step); this BlockSpec path is
    # still latency-bound per row, just with deeper buffering.
    row_spec = pl.BlockSpec((1, E_pad), lambda b, s, ids: (ids[b, s], 0),
                            pipeline_mode=pl.Buffered(gather_buffers))
    grid_spec = pltpu.PrefetchScalarGridSpec(
        num_scalar_prefetch=1,
        grid=(B_pad, S),
        in_specs=[row_spec],
        out_specs=pl.BlockSpec((1, E_pad), lambda b, s, ids: (b, 0)),
    )
    return pl.pallas_call(
        _gather_pool_kernel,
        out_shape=jax.ShapeDtypeStruct((B_pad, E_pad), jnp.float32),
        grid_spec=grid_spec,
        compiler_params=pltpu.CompilerParams(
            dimension_semantics=("parallel", "arbitrary")),
    )(idx_p, emb_p)


def _mlp_forward(pooled, w1_p, b1_p, w2_p, b2_p, tb):
    B_pad, E_pad = pooled.shape
    H_pad = w1_p.shape[1]
    C_pad = w2_p.shape[1]
    nb = B_pad // tb
    inv = lambda i: (0, 0)   # index-invariant blocks: DMA'd once, never redone
    return pl.pallas_call(
        _mlp_kernel,
        out_shape=jax.ShapeDtypeStruct((B_pad, C_pad), jnp.float32),
        grid=(nb,),
        in_specs=[
            pl.BlockSpec((tb, E_pad), lambda i: (i, 0)),
            pl.BlockSpec((E_pad, H_pad), inv),
            pl.BlockSpec((1, H_pad), inv),
            pl.BlockSpec((H_pad, C_pad), inv),
            pl.BlockSpec((1, C_pad), inv),
        ],
        out_specs=pl.BlockSpec((tb, C_pad), lambda i: (i, 0)),
        compiler_params=pltpu.CompilerParams(
            dimension_semantics=("parallel",),
            vmem_limit_bytes=_VMEM_LIMIT_BYTES),
    )(pooled, w1_p, b1_p, w2_p, b2_p)


def _fused_forward(idx_p, emb_p, w1_p, b1_p, w2_p, b2_p, tb):
    B_pad, S = idx_p.shape
    V_pad, E_pad = emb_p.shape
    H_pad = w1_p.shape[1]
    C_pad = w2_p.shape[1]
    nb = B_pad // tb
    # Invariant blocks (table + weights) have constant block indices, so the
    # pipeline fetches them once and never re-issues the DMA; default
    # buffering only costs an unused second buffer (negligible at these sizes,
    # switch to pl.Buffered(1) if VMEM ever gets tight).
    inv = lambda i: (0, 0)
    return pl.pallas_call(
        _fused_dan_kernel,
        out_shape=jax.ShapeDtypeStruct((B_pad, C_pad), jnp.float32),
        grid=(nb,),
        in_specs=[
            pl.BlockSpec((tb, S), lambda i: (i, 0)),
            pl.BlockSpec((V_pad, E_pad), inv),
            pl.BlockSpec((E_pad, H_pad), inv),
            pl.BlockSpec((1, H_pad), inv),
            pl.BlockSpec((H_pad, C_pad), inv),
            pl.BlockSpec((1, C_pad), inv),
        ],
        out_specs=pl.BlockSpec((tb, C_pad), lambda i: (i, 0)),
        compiler_params=pltpu.CompilerParams(
            dimension_semantics=("parallel",),
            vmem_limit_bytes=_VMEM_LIMIT_BYTES),
    )(idx_p, emb_p, w1_p, b1_p, w2_p, b2_p)


# ---------------------------------------------------------------------------
# One-time parameter prep (hoisted out of the per-call forward).
# ---------------------------------------------------------------------------
def prepare_params(emb, w1, b1, w2, b2, seq_len, *, param_dtype=jnp.bfloat16):
    """Pad/cast parameters once at init.

    * emb / w1 / w2 -> param_dtype (bf16 default: MXU-native on v6e/v7x and
      halves table bytes); biases + accumulation stay f32.
    * The 1/seq_len mean is folded into fc1, so the kernels pool a SUM.
    * Matmul/output dims are lane-padded to 128; pad logit columns get a
      -1e30 bias so they contribute exp()==0 to the log_softmax normalizer.
    """
    V, E = emb.shape
    H = w1.shape[1]
    C = w2.shape[1]
    E_pad = _round_up(E, LANE)
    H_pad = _round_up(H, LANE)
    C_pad = _round_up(C, LANE)
    V_pad = _round_up(V, SUBLANE)

    emb_p = jnp.zeros((V_pad, E_pad), param_dtype).at[:V, :E].set(
        emb.astype(param_dtype))
    w1_p = jnp.zeros((E_pad, H_pad), param_dtype).at[:E, :H].set(
        (w1 / seq_len).astype(param_dtype))
    b1_p = jnp.zeros((1, H_pad), jnp.float32).at[0, :H].set(
        b1.reshape(-1).astype(jnp.float32))
    w2_p = jnp.zeros((H_pad, C_pad), param_dtype).at[:H, :C].set(
        w2.astype(param_dtype))
    b2_p = jnp.full((1, C_pad), NEG_INF, jnp.float32).at[0, :C].set(
        b2.reshape(-1).astype(jnp.float32))
    return dict(emb=emb_p, w1=w1_p, b1=b1_p, w2=w2_p, b2=b2_p,
                n_classes=C, vocab=V, seq_len=seq_len)


def _choose_batch_tile(B, batch_tile, *, counts_cols=None):
    B_pad = _round_up(B, SUBLANE)
    tb = min(_round_up(batch_tile, SUBLANE), B_pad)
    if counts_cols is not None:
        # Keep the in-kernel (tb, V_pad) f32 count matrix inside its budget.
        cap = _COUNTS_VMEM_BUDGET // (counts_cols * 4)
        cap = max(SUBLANE, cap // SUBLANE * SUBLANE)
        tb = min(tb, cap)
    # v7x megacore: prefer >=2 batch tiles so the "parallel" grid axis shards
    # across both TensorCores (harmless on single-TC v5e/v6e).
    if B_pad // tb < 2 and B_pad >= 2 * SUBLANE:
        tb = min(tb, _round_up(B_pad // 2, SUBLANE))
    B_pad = _round_up(B_pad, tb)
    return tb, B_pad


def dan_forward(idx, params, *, batch_tile=512, force_gather_path=False):
    """NN2RANDOM_DAN forward (eval semantics) with prepared parameters."""
    B, S = idx.shape
    assert S == params["seq_len"], "params were prepared for a different seq_len"
    emb_p, w1_p, b1_p, w2_p, b2_p = (params["emb"], params["w1"], params["b1"],
                                     params["w2"], params["b2"])
    C = params["n_classes"]
    V_pad, E_pad = emb_p.shape
    table_bytes = V_pad * E_pad * jnp.dtype(emb_p.dtype).itemsize
    use_fused = (not force_gather_path) and table_bytes <= _TABLE_VMEM_BUDGET

    tb, B_pad = _choose_batch_tile(B, batch_tile,
                                   counts_cols=V_pad if use_fused else None)
    # TODO(synk): token ids must lie in [0, vocab); ids >= vocab contribute
    # zero on the fused path and are undefined on the gather path (torch's
    # nn.Embedding would raise an error instead).
    idx_p = jnp.zeros((B_pad, S), jnp.int32).at[:B].set(idx.astype(jnp.int32))

    if use_fused:
        out_p = _fused_forward(idx_p, emb_p, w1_p, b1_p, w2_p, b2_p, tb)
    else:
        pooled = _gather_pool(idx_p, emb_p)
        out_p = _mlp_forward(pooled, w1_p, b1_p, w2_p, b2_p, tb)
    return out_p[:B, :C]


# ---------------------------------------------------------------------------
# Pure-JAX reference (dropout == identity, i.e. eval-mode forward).
# ---------------------------------------------------------------------------
def reference_forward(idx, emb, w1, b1, w2, b2, *, matmul_pool=False):
    if matmul_pool:
        # Same pooling structure as the fused kernel (counts @ table).
        counts = jax.nn.one_hot(idx, emb.shape[0], dtype=jnp.float32).sum(axis=1)
        x = (counts @ emb) / idx.shape[1]
    else:
        x = emb[idx].mean(axis=1)
    h = jnp.maximum(x @ w1 + b1, 0.0)
    logits = h @ w2 + b2
    return jax.nn.log_softmax(logits, axis=-1)


if __name__ == "__main__":
    B, S = 2, 8          # batch, sequence length
    V = 64               # synthetic vocab (stands in for the GloVe indexer)
    E = 32               # embed_size
    H = 32               # hidden_size

    key = jax.random.PRNGKey(0)
    k_idx, k_emb, k_w1, k_b1, k_w2, k_b2 = jax.random.split(key, 6)

    idx = jax.random.randint(k_idx, (B, S), 0, V, dtype=jnp.int32)
    emb = jax.random.normal(k_emb, (V, E), dtype=jnp.float32) * 0.5
    w1 = jax.random.normal(k_w1, (E, H), dtype=jnp.float32) * 0.3
    b1 = jax.random.normal(k_b1, (H,), dtype=jnp.float32) * 0.1
    w2 = jax.random.normal(k_w2, (H, 2), dtype=jnp.float32) * 0.3
    b2 = jax.random.normal(k_b2, (2,), dtype=jnp.float32) * 0.1

    ref = reference_forward(idx, emb, w1, b1, w2, b2)
    ref_mm = reference_forward(idx, emb, w1, b1, w2, b2, matmul_pool=True)

    # f32 parameters: structural check against the matmul-pooled reference.
    params_f32 = prepare_params(emb, w1, b1, w2, b2, S, param_dtype=jnp.float32)
    out_f32 = jax.block_until_ready(dan_forward(idx, params_f32))
    assert out_f32.shape == (B, 2)
    assert jnp.allclose(jnp.exp(out_f32).sum(-1), 1.0, atol=1e-4), out_f32
    assert jnp.allclose(out_f32, ref_mm, atol=1e-3, rtol=1e-3), (out_f32, ref_mm)

    # bf16 parameters (production config): matches the f32 reference within
    # bf16 quantization error.
    params_bf16 = prepare_params(emb, w1, b1, w2, b2, S,
                                 param_dtype=jnp.bfloat16)
    out_bf16 = jax.block_until_ready(dan_forward(idx, params_bf16))
    assert out_bf16.shape == (B, 2)
    assert jnp.allclose(out_bf16, ref, atol=4e-2, rtol=4e-2), (out_bf16, ref)

    print("KERNEL_OK")
</pallas_src>

<mosaic_0001>
module attributes {stable_mosaic.version = 11 : i64} {
  func.func @_fused_dan_kernel(%arg0: i32, %arg1: memref<8x8xi32, #tpu.memory_space<vmem>>, %arg2: memref<64x128xf32, #tpu.memory_space<vmem>>, %arg3: memref<128x128xf32, #tpu.memory_space<vmem>>, %arg4: memref<1x128xf32, #tpu.memory_space<vmem>>, %arg5: memref<128x128xf32, #tpu.memory_space<vmem>>, %arg6: memref<1x128xf32, #tpu.memory_space<vmem>>, %arg7: memref<8x128xf32, #tpu.memory_space<vmem>>) attributes {dimension_semantics = [#tpu.dimension_semantics<parallel>], iteration_bounds = array<i64: 1>, scalar_prefetch = 0 : i64, scratch_operands = 0 : i64, tpu.core_type = #tpu.core_type<tc>, window_params = [{transform_indices = @transform_0, window_bounds = array<i64: 8, 8>}, {pipeline_mode = #tpu.pipeline_mode<synchronous>, transform_indices = @transform_1, window_bounds = array<i64: 64, 128>}, {pipeline_mode = #tpu.pipeline_mode<synchronous>, transform_indices = @transform_2, window_bounds = array<i64: 128, 128>}, {pipeline_mode = #tpu.pipeline_mode<synchronous>, transform_indices = @transform_3, window_bounds = array<i64: 1, 128>}, {pipeline_mode = #tpu.pipeline_mode<synchronous>, transform_indices = @transform_4, window_bounds = array<i64: 128, 128>}, {pipeline_mode = #tpu.pipeline_mode<synchronous>, transform_indices = @transform_5, window_bounds = array<i64: 1, 128>}, {transform_indices = @transform_6, window_bounds = array<i64: 8, 128>}]} {
    %c0 = arith.constant 0 : index
    %c0_0 = arith.constant 0 : index
    %0 = vector.load %arg1[%c0, %c0_0] : memref<8x8xi32, #tpu.memory_space<vmem>>, vector<8x8xi32>
    %1 = tpu.iota {dimensions = array<i32: 1>} : vector<1x64xi32>
    %cst = arith.constant 0.000000e+00 : f32
    %2 = vector.broadcast %cst : f32 to vector<8x64xf32>
    %3 = vector.extract_strided_slice %0 {offsets = [0, 0], sizes = [8, 1], strides = [1, 1]} : vector<8x8xi32> to vector<8x1xi32>
    %4 = vector.broadcast %3 : vector<8x1xi32> to vector<8x64xi32>
    %5 = vector.broadcast %1 : vector<1x64xi32> to vector<8x64xi32>
    %6 = arith.cmpi eq, %4, %5 : vector<8x64xi32>
    %7 = arith.extui %6 : vector<8x64xi1> to vector<8x64xi32>
    %8 = arith.sitofp %7 : vector<8x64xi32> to vector<8x64xf32>
    %9 = arith.addf %2, %8 : vector<8x64xf32>
    %10 = vector.extract_strided_slice %0 {offsets = [0, 1], sizes = [8, 1], strides = [1, 1]} : vector<8x8xi32> to vector<8x1xi32>
    %11 = vector.broadcast %10 : vector<8x1xi32> to vector<8x64xi32>
    %12 = vector.broadcast %1 : vector<1x64xi32> to vector<8x64xi32>
    %13 = arith.cmpi eq, %11, %12 : vector<8x64xi32>
    %14 = arith.extui %13 : vector<8x64xi1> to vector<8x64xi32>
    %15 = arith.sitofp %14 : vector<8x64xi32> to vector<8x64xf32>
    %16 = arith.addf %9, %15 : vector<8x64xf32>
    %17 = vector.extract_strided_slice %0 {offsets = [0, 2], sizes = [8, 1], strides = [1, 1]} : vector<8x8xi32> to vector<8x1xi32>
    %18 = vector.broadcast %17 : vector<8x1xi32> to vector<8x64xi32>
    %19 = vector.broadcast %1 : vector<1x64xi32> to vector<8x64xi32>
    %20 = arith.cmpi eq, %18, %19 : vector<8x64xi32>
    %21 = arith.extui %20 : vector<8x64xi1> to vector<8x64xi32>
    %22 = arith.sitofp %21 : vector<8x64xi32> to vector<8x64xf32>
    %23 = arith.addf %16, %22 : vector<8x64xf32>
    %24 = vector.extract_strided_slice %0 {offsets = [0, 3], sizes = [8, 1], strides = [1, 1]} : vector<8x8xi32> to vector<8x1xi32>
    %25 = vector.broadcast %24 : vector<8x1xi32> to vector<8x64xi32>
    %26 = vector.broadcast %1 : vector<1x64xi32> to vector<8x64xi32>
    %27 = arith.cmpi eq, %25, %26 : vector<8x64xi32>
    %28 = arith.extui %27 : vector<8x64xi1> to vector<8x64xi32>
    %29 = arith.sitofp %28 : vector<8x64xi32> to vector<8x64xf32>
    %30 = arith.addf %23, %29 : vector<8x64xf32>
    %31 = vector.extract_strided_slice %0 {offsets = [0, 4], sizes = [8, 1], strides = [1, 1]} : vector<8x8xi32> to vector<8x1xi32>
    %32 = vector.broadcast %31 : vector<8x1xi32> to vector<8x64xi32>
    %33 = vector.broadcast %1 : vector<1x64xi32> to vector<8x64xi32>
    %34 = arith.cmpi eq, %32, %33 : vector<8x64xi32>
    %35 = arith.extui %34 : vector<8x64xi1> to vector<8x64xi32>
    %36 = arith.sitofp %35 : vector<8x64xi32> to vector<8x64xf32>
    %37 = arith.addf %30, %36 : vector<8x64xf32>
    %38 = vector.extract_strided_slice %0 {offsets = [0, 5], sizes = [8, 1], strides = [1, 1]} : vector<8x8xi32> to vector<8x1xi32>
    %39 = vector.broadcast %38 : vector<8x1xi32> to vector<8x64xi32>
    %40 = vector.broadcast %1 : vector<1x64xi32> to vector<8x64xi32>
    %41 = arith.cmpi eq, %39, %40 : vector<8x64xi32>
    %42 = arith.extui %41 : vector<8x64xi1> to vector<8x64xi32>
    %43 = arith.sitofp %42 : vector<8x64xi32> to vector<8x64xf32>
    %44 = arith.addf %37, %43 : vector<8x64xf32>
    %45 = vector.extract_strided_slice %0 {offsets = [0, 6], sizes = [8, 1], strides = [1, 1]} : vector<8x8xi32> to vector<8x1xi32>
    %46 = vector.broadcast %45 : vector<8x1xi32> to vector<8x64xi32>
    %47 = vector.broadcast %1 : vector<1x64xi32> to vector<8x64xi32>
    %48 = arith.cmpi eq, %46, %47 : vector<8x64xi32>
    %49 = arith.extui %48 : vector<8x64xi1> to vector<8x64xi32>
    %50 = arith.sitofp %49 : vector<8x64xi32> to vector<8x64xf32>
    %51 = arith.addf %44, %50 : vector<8x64xf32>
    %52 = vector.extract_strided_slice %0 {offsets = [0, 7], sizes = [8, 1], strides = [1, 1]} : vector<8x8xi32> to vector<8x1xi32>
    %53 = vector.broadcast %52 : vector<8x1xi32> to vector<8x64xi32>
    %54 = vector.broadcast %1 : vector<1x64xi32> to vector<8x64xi32>
    %55 = arith.cmpi eq, %53, %54 : vector<8x64xi32>
    %56 = arith.extui %55 : vector<8x64xi1> to vector<8x64xi32>
    %57 = arith.sitofp %56 : vector<8x64xi32> to vector<8x64xf32>
    %58 = arith.addf %51, %57 : vector<8x64xf32>
    %c0_1 = arith.constant 0 : index
    %c0_2 = arith.constant 0 : index
    %59 = vector.load %arg2[%c0_1, %c0_2] : memref<64x128xf32, #tpu.memory_space<vmem>>, vector<64x128xf32>
    %cst_3 = arith.constant dense<0.000000e+00> : vector<8x128xf32>
    %60 = tpu.matmul %58, %59, %cst_3 {dimension_numbers = #tpu.dot_dimension_numbers<[1], [0], [0], [1], [0, 0, 1, 1], [], []>} : vector<8x64xf32>, vector<64x128xf32>, vector<8x128xf32> -> vector<8x128xf32>
    %c0_4 = arith.constant 0 : index
    %c0_5 = arith.constant 0 : index
    %61 = vector.load %arg3[%c0_4, %c0_5] : memref<128x128xf32, #tpu.memory_space<vmem>>, vector<128x128xf32>
    %cst_6 = arith.constant dense<0.000000e+00> : vector<8x128xf32>
    %62 = tpu.matmul %60, %61, %cst_6 {dimension_numbers = #tpu.dot_dimension_numbers<[1], [0], [0], [1], [0, 0, 1, 1], [], []>} : vector<8x128xf32>, vector<128x128xf32>, vector<8x128xf32> -> vector<8x128xf32>
    %c0_7 = arith.constant 0 : index
    %c0_8 = arith.constant 0 : index
    %63 = vector.load %arg4[%c0_7, %c0_8] : memref<1x128xf32, #tpu.memory_space<vmem>>, vector<1x128xf32>
    %64 = vector.broadcast %63 : vector<1x128xf32> to vector<8x128xf32>
    %65 = arith.addf %62, %64 : vector<8x128xf32>
    %cst_9 = arith.constant 0.000000e+00 : f32
    %66 = vector.broadcast %cst_9 : f32 to vector<8x128xf32>
    %67 = arith.maximumf %65, %66 : vector<8x128xf32>
    %c0_10 = arith.constant 0 : index
    %c0_11 = arith.constant 0 : index
    %68 = vector.load %arg5[%c0_10, %c0_11] : memref<128x128xf32, #tpu.memory_space<vmem>>, vector<128x128xf32>
    %cst_12 = arith.constant dense<0.000000e+00> : vector<8x128xf32>
    %69 = tpu.matmul %67, %68, %cst_12 {dimension_numbers = #tpu.dot_dimension_numbers<[1], [0], [0], [1], [0, 0, 1, 1], [], []>} : vector<8x128xf32>, vector<128x128xf32>, vector<8x128xf32> -> vector<8x128xf32>
    %c0_13 = arith.constant 0 : index
    %c0_14 = arith.constant 0 : index
    %70 = vector.load %arg6[%c0_13, %c0_14] : memref<1x128xf32, #tpu.memory_space<vmem>>, vector<1x128xf32>
    %71 = vector.broadcast %70 : vector<1x128xf32> to vector<8x128xf32>
    %72 = arith.addf %69, %71 : vector<8x128xf32>
    %cst_15 = arith.constant dense<0xFF800000> : vector<8xf32>
    %73 = vector.multi_reduction <maximumf>, %72, %cst_15 [1] : vector<8x128xf32> to vector<8xf32>
    %74 = vector.shape_cast %73 : vector<8xf32> to vector<8x1xf32>
    %75 = vector.broadcast %74 : vector<8x1xf32> to vector<8x128xf32>
    %76 = arith.subf %72, %75 : vector<8x128xf32>
    %77 = math.exp %76 : vector<8x128xf32>
    %cst_16 = arith.constant dense<0.000000e+00> : vector<8xf32>
    %78 = vector.multi_reduction <add>, %77, %cst_16 [1] : vector<8x128xf32> to vector<8xf32>
    %79 = vector.shape_cast %78 : vector<8xf32> to vector<8x1xf32>
    %80 = math.log %79 : vector<8x1xf32>
    %81 = vector.broadcast %80 : vector<8x1xf32> to vector<8x128xf32>
    %82 = arith.subf %76, %81 : vector<8x128xf32>
    %c0_17 = arith.constant 0 : index
    %c0_18 = arith.constant 0 : index
    %83 = vector.load %arg7[%c0_17, %c0_18] : memref<8x128xf32, #tpu.memory_space<vmem>>, vector<8x128xf32>
    tpu.vector_store %arg7[%c0_17, %c0_18], %82 {strides = array<i32>} : memref<8x128xf32, #tpu.memory_space<vmem>>, vector<8x128xf32>,
    return
  }
  func.func @transform_0(%arg0: i32) -> (i32, i32) {
    %c0_i32 = arith.constant 0 : i32
    %c0_i32_0 = arith.constant 0 : i32
    return %arg0, %c0_i32 : i32, i32
  }
  func.func @transform_1(%arg0: i32) -> (i32, i32) {
    %c0_i32 = arith.constant 0 : i32
    %c0_i32_0 = arith.constant 0 : i32
    %c0_i32_1 = arith.constant 0 : i32
    return %c0_i32, %c0_i32_0 : i32, i32
  }
  func.func @transform_2(%arg0: i32) -> (i32, i32) {
    %c0_i32 = arith.constant 0 : i32
    %c0_i32_0 = arith.constant 0 : i32
    %c0_i32_1 = arith.constant 0 : i32
    return %c0_i32, %c0_i32_0 : i32, i32
  }
  func.func @transform_3(%arg0: i32) -> (i32, i32) {
    %c0_i32 = arith.constant 0 : i32
    %c0_i32_0 = arith.constant 0 : i32
    %c0_i32_1 = arith.constant 0 : i32
    return %c0_i32, %c0_i32_0 : i32, i32
  }
  func.func @transform_4(%arg0: i32) -> (i32, i32) {
    %c0_i32 = arith.constant 0 : i32
    %c0_i32_0 = arith.constant 0 : i32
    %c0_i32_1 = arith.constant 0 : i32
    return %c0_i32, %c0_i32_0 : i32, i32
  }
  func.func @transform_5(%arg0: i32) -> (i32, i32) {
    %c0_i32 = arith.constant 0 : i32
    %c0_i32_0 = arith.constant 0 : i32
    %c0_i32_1 = arith.constant 0 : i32
    return %c0_i32, %c0_i32_0 : i32, i32
  }
  func.func @transform_6(%arg0: i32) -> (i32, i32) {
    %c0_i32 = arith.constant 0 : i32
    %c0_i32_0 = arith.constant 0 : i32
    return %arg0, %c0_i32 : i32, i32
  }
}

</mosaic_0001>

<llo_original>
// kernel: tpu_custom_call.1
$region0: #{tpu_custom_call.1}
  #allocation0 [shape = 'u32[]', space=smem, size = 0x4, offset = 0x4, fixed_abs, tag = 'smem constant byte address 0x4 - core index']
  #allocation1 [shape = 'u32[144,128]{1,0:T(1,128)}', space=vmem, size = 0x12000, scoped, tag = 'internal scratch']
  %s0 = inlined_call_operand.hbm [shape: s32[8,8], index: 0, kind: input, shape index: {}]
  %s1 = inlined_call_operand.hbm [shape: f32[64,128], index: 1, kind: input, shape index: {}]
  %s2 = inlined_call_operand.hbm [shape: f32[128,128], index: 2, kind: input, shape index: {}]
  %s3 = inlined_call_operand.vmem [shape: f32[1,128], index: 3, kind: input, shape index: {}]
  %s4 = inlined_call_operand.hbm [shape: f32[128,128], index: 4, kind: input, shape index: {}]
  %s5 = inlined_call_operand.vmem [shape: f32[1,128], index: 5, kind: input, shape index: {}]
  %s6 = inlined_call_operand.hbm [shape: f32[8,128], index: 6, kind: output, shape index: {}]
  %s7 = sld [smem:[#allocation0]]
  $region50: #{tpu_custom_call.1} parent=0
    _
  %s9 = ssub.s32 1, %s7
  %s10 = scalar_select 0, %s9, %s7
  $region1: #{tpu_custom_call.1} parent=0
    #allocation2 [shape = 'u8[4096]{0}', space=vmem, size = 0x1000, scoped, tag = 'input window, operand 0, single buffered']
    #allocation3 [shape = 's32[1]{0}', space=sflag, size = 0x4, scoped, tag = 'scoped memory for tpu_custom_call.1']
    #allocation4 [shape = 's32[1]{0}', space=sflag, size = 0x4, scoped, tag = 'scoped memory for tpu_custom_call.1']
    #allocation5 [shape = 'u8[32768]{0}', space=vmem, size = 0x8000, scoped, tag = 'input window, operand 1, single buffered']
    #allocation6 [shape = 's32[1]{0}', space=sflag, size = 0x4, scoped, tag = 'scoped memory for tpu_custom_call.1']
    #allocation7 [shape = 'u8[65536]{0}', space=vmem, size = 0x10000, scoped, tag = 'input window, operand 2, single buffered']
    #allocation8 [shape = 'u8[65536]{0}', space=vmem, size = 0x10000, scoped, tag = 'input window, operand 4, single buffered']
    #allocation9 [shape = 's32[1]{0}', space=sflag, size = 0x4, scoped, tag = 'scoped memory for tpu_custom_call.1']
    #allocation10 [shape = 'u8[4096]{0}', space=vmem, size = 0x1000, scoped, tag = 'output window, operand 0, single buffered']
    %11 = vsyncpa [#allocation3], 0
    %12 = vsyncpa [#allocation6], 0
    %13 = vsyncpa [#allocation9], 0
    %14 = vsyncpa [#allocation4], 0
    // Predicated region
    $region2: #{tpu_custom_call.1} parent=1 // pred_check
      _
    $region3: #{tpu_custom_call.1} parent=1 // pred_check_branch
      %16 = sbr.rel (0) target = $region5
    $region4: #{tpu_custom_call.1} parent=1 // pred_region
      %s18 = ssub.s32 128, 128
      %19 = vsyncadd [#allocation3], %s18
      %s21 = sshll.u32 [#allocation2], 4
      %s22 = int_to_ptr.vmem [resolvable:$true] %s21
      %24 = dma.hbm_to_vmem [thread:$0]  %s0, 128, %s22, [#allocation3]
    $region5: #{tpu_custom_call.1} parent=1 // pred_fallthru
      _
    // Predicated region
    $region6: #{tpu_custom_call.1} parent=1 // pred_check
      _
    $region7: #{tpu_custom_call.1} parent=1 // pred_check_branch
      %26 = sbr.rel (0) target = $region9
    $region8: #{tpu_custom_call.1} parent=1 // pred_region
      %s28 = ssub.s32 1024, 1024
      %29 = vsyncadd [#allocation6], %s28
      %s30 = sshll.u32 [#allocation5], 4
      %s31 = int_to_ptr.vmem [resolvable:$true] %s30
      %36 = dma.hbm_to_vmem [thread:$0]  %s1, 1024, %s31, [#allocation6], 128, 128, 8
    $region9: #{tpu_custom_call.1} parent=1 // pred_fallthru
      _
    // Predicated region
    $region10: #{tpu_custom_call.1} parent=1 // pred_check
      _
    $region11: #{tpu_custom_call.1} parent=1 // pred_check_branch
      %38 = sbr.rel (0) target = $region13
    $region12: #{tpu_custom_call.1} parent=1 // pred_region
      %s40 = ssub.s32 2048, 2048
      %41 = vsyncadd [#allocation6], %s40
      %s42 = sshll.u32 [#allocation7], 4
      %s43 = int_to_ptr.vmem [resolvable:$true] %s42
      %48 = dma.hbm_to_vmem [thread:$0]  %s2, 2048, %s43, [#allocation6], 128, 128, 8
    $region13: #{tpu_custom_call.1} parent=1 // pred_fallthru
      _
    // Predicated region
    $region14: #{tpu_custom_call.1} parent=1 // pred_check
      _
    $region15: #{tpu_custom_call.1} parent=1 // pred_check_branch
      %50 = sbr.rel (0) target = $region17
    $region16: #{tpu_custom_call.1} parent=1 // pred_region
      _
    $region17: #{tpu_custom_call.1} parent=1 // pred_fallthru
      _
    // Predicated region
    $region18: #{tpu_custom_call.1} parent=1 // pred_check
      _
    $region19: #{tpu_custom_call.1} parent=1 // pred_check_branch
      %52 = sbr.rel (0) target = $region21
    $region20: #{tpu_custom_call.1} parent=1 // pred_region
      %s54 = ssub.s32 2048, 2048
      %55 = vsyncadd [#allocation9], %s54
      %s56 = sshll.u32 [#allocation8], 4
      %s57 = int_to_ptr.vmem [resolvable:$true] %s56
      %62 = dma.hbm_to_vmem [thread:$0]  %s4, 2048, %s57, [#allocation9], 128, 128, 8
    $region21: #{tpu_custom_call.1} parent=1 // pred_fallthru
      _
    // Predicated region
    $region22: #{tpu_custom_call.1} parent=1 // pred_check
      _
    $region23: #{tpu_custom_call.1} parent=1 // pred_check_branch
      %64 = sbr.rel (0) target = $region25
    $region24: #{tpu_custom_call.1} parent=1 // pred_region
      _
    $region25: #{tpu_custom_call.1} parent=1 // pred_fallthru
      _
    // Predicated region
    $region26: #{tpu_custom_call.1} parent=1 // pred_check
      _
    $region27: #{tpu_custom_call.1} parent=1 // pred_check_branch
      %66 = sbr.rel (0) target = $region29
    $region28: #{tpu_custom_call.1} parent=1 // pred_region
      %67 = dma.done [#allocation3], 128
    $region29: #{tpu_custom_call.1} parent=1 // pred_fallthru
      _
    // Predicated region
    $region30: #{tpu_custom_call.1} parent=1 // pred_check
      _
    $region31: #{tpu_custom_call.1} parent=1 // pred_check_branch
      %69 = sbr.rel (0) target = $region33
    $region32: #{tpu_custom_call.1} parent=1 // pred_region
      %70 = dma.done [#allocation6], 1024
    $region33: #{tpu_custom_call.1} parent=1 // pred_fallthru
      _
    // Predicated region
    $region34: #{tpu_custom_call.1} parent=1 // pred_check
      _
    $region35: #{tpu_custom_call.1} parent=1 // pred_check_branch
      %72 = sbr.rel (0) target = $region37
    $region36: #{tpu_custom_call.1} parent=1 // pred_region
      %73 = dma.done [#allocation6], 2048
    $region37: #{tpu_custom_call.1} parent=1 // pred_fallthru
      _
    // Predicated region
    $region38: #{tpu_custom_call.1} parent=1 // pred_check
      _
    $region39: #{tpu_custom_call.1} parent=1 // pred_check_branch
      %75 = sbr.rel (0) target = $region41
    $region40: #{tpu_custom_call.1} parent=1 // pred_region
      %76 = dma.done [#allocation9], 2048
    $region41: #{tpu_custom_call.1} parent=1 // pred_fallthru
      _
    %v77 = vld [vmem:[#allocation2] sm:$0xff]
    %v78 = vlaneseq
    %v79 = vand.u32 %v78, 127
    %80 = vset.pattern.permute.xlu0 0
    %81 = vperm.xlu0 %80, %v77
    %v82 = vpop.permute.xlu0 %81
    %vm83 = vcmp.eq.s32.totalorder %v82, %v79
    %v84 = vsel %vm83, 1, 0
    %v85 = vcvt.s32.f32 %v84
    %v86 = vadd.f32 %v85, 0.0
    %87 = vset.pattern.permute.xlu0 1
    %88 = vperm.xlu0 %87, %v77
    %v89 = vpop.permute.xlu0 %88
    %vm90 = vcmp.eq.s32.totalorder %v89, %v79
    %v91 = vsel %vm90, 1, 0
    %v92 = vcvt.s32.f32 %v91
    %v93 = vadd.f32 %v86, %v92
    %94 = vset.pattern.permute.xlu0 2
    %95 = vperm.xlu0 %94, %v77
    %v96 = vpop.permute.xlu0 %95
    %vm97 = vcmp.eq.s32.totalorder %v96, %v79
    %v98 = vsel %vm97, 1, 0
    %v99 = vcvt.s32.f32 %v98
    %v100 = vadd.f32 %v93, %v99
    %101 = vset.pattern.permute.xlu0 3
    %102 = vperm.xlu0 %101, %v77
    %v103 = vpop.permute.xlu0 %102
    %vm104 = vcmp.eq.s32.totalorder %v103, %v79
    %v105 = vsel %vm104, 1, 0
    %v106 = vcvt.s32.f32 %v105
    %v107 = vadd.f32 %v100, %v106
    %108 = vset.pattern.permute.xlu0 4
    %109 = vperm.xlu0 %108, %v77
    %v110 = vpop.permute.xlu0 %109
    %vm111 = vcmp.eq.s32.totalorder %v110, %v79
    %v112 = vsel %vm111, 1, 0
    %v113 = vcvt.s32.f32 %v112
    %v114 = vadd.f32 %v107, %v113
    %115 = vset.pattern.permute.xlu0 5
    %116 = vperm.xlu0 %115, %v77
    %v117 = vpop.permute.xlu0 %116
    %vm118 = vcmp.eq.s32.totalorder %v117, %v79
    %v119 = vsel %vm118, 1, 0
    %v120 = vcvt.s32.f32 %v119
    %v121 = vadd.f32 %v114, %v120
    %122 = vset.pattern.permute.xlu0 6
    %123 = vperm.xlu0 %122, %v77
    %v124 = vpop.permute.xlu0 %123
    %vm125 = vcmp.eq.s32.totalorder %v124, %v79
    %v126 = vsel %vm125, 1, 0
    %v127 = vcvt.s32.f32 %v126
    %v128 = vadd.f32 %v121, %v127
    %129 = vset.pattern.permute.xlu0 7
    %130 = vperm.xlu0 %129, %v77
    %v131 = vpop.permute.xlu0 %130
    %vm132 = vcmp.eq.s32.totalorder %v131, %v79
    %v133 = vsel %vm132, 1, 0
    %v134 = vcvt.s32.f32 %v133
    %v135 = vadd.f32 %v128, %v134
    %v136 = vld [vmem:[#allocation5] sm:$0xff]
    %v137 = vld [vmem:[#allocation5 + $0x8] sm:$0xff]
    %v138 = vld [vmem:[#allocation5 + $0x10] sm:$0xff]
    %v139 = vld [vmem:[#allocation5 + $0x18] sm:$0xff]
    %v140 = vld [vmem:[#allocation5 + $0x20] sm:$0xff]
    %v141 = vld [vmem:[#allocation5 + $0x28] sm:$0xff]
    %v142 = vld [vmem:[#allocation5 + $0x30] sm:$0xff]
    %v143 = vld [vmem:[#allocation5 + $0x38] sm:$0xff]
    %vm144 = vcmask 523264
    %v146 = vsel %vm144, %v135, 0
    %148 = vmatprep.subr.mxu0 0.0
    %149 = vmatpush1.msra.mxu0 %v136
    %150 = vmatprep.subr.mxu0 0.0
    %151 = vmatpush1.msra.mxu0 %v137
    %152 = vmatprep.subr.mxu0 0.0
    %153 = vmatpush1.msra.mxu0 %v138
    %154 = vmatprep.subr.mxu0 0.0
    %155 = vmatpush1.msra.mxu0 %v139
    %156 = vmatprep.subr.mxu0 0.0
    %157 = vmatpush1.msra.mxu0 %v140
    %158 = vmatprep.subr.mxu0 0.0
    %159 = vmatpush1.msra.mxu0 %v141
    %160 = vmatprep.subr.mxu0 0.0
    %161 = vmatpush1.msra.mxu0 %v142
    %162 = vmatprep.subr.mxu0 0.0
    %163 = vmatpush1.msra.mxu0 %v143
    %164 = vmatprep.subr.mxu0 0.0
    %165 = vmatpush1.msra.mxu0 0.0
    %166 = vmatprep.subr.mxu0 0.0
    %167 = vmatpush1.msra.mxu0 0.0
    %168 = vmatprep.subr.mxu0 0.0
    %169 = vmatpush1.msra.mxu0 0.0
    %170 = vmatprep.subr.mxu0 0.0
    %171 = vmatpush1.msra.mxu0 0.0
    %172 = vmatprep.subr.mxu0 0.0
    %173 = vmatpush1.msra.mxu0 0.0
    %174 = vmatprep.subr.mxu0 0.0
    %175 = vmatpush1.msra.mxu0 0.0
    %176 = vmatprep.subr.mxu0 0.0
    %177 = vmatpush1.msra.mxu0 0.0
    %178 = vmatprep.subr.mxu0 0.0
    %179 = vmatpush1.msra.mxu0 0.0
    %180 = vmatprep.subr.mxu0 0.0
    %181 = vmatpush1.msra.mxu0 0.0
    %182 = vmatprep.subr.mxu0 0.0
    %183 = vmatpush1.msra.mxu0 0.0
    %184 = vmatprep.subr.mxu0 0.0
    %185 = vmatpush1.msra.mxu0 0.0
    %186 = vmatprep.subr.mxu0 0.0
    %187 = vmatpush1.msra.mxu0 0.0
    %188 = vmatprep.subr.mxu0 0.0
    %189 = vmatpush1.msra.mxu0 0.0
    %190 = vmatprep.subr.mxu0 0.0
    %191 = vmatpush1.msra.mxu0 0.0
    %192 = vmatprep.subr.mxu0 0.0
    %193 = vmatpush1.msra.mxu0 0.0
    %194 = vmatprep.subr.mxu0 0.0
    %195 = vmatpush1.msra.mxu0 0.0
    %196 = vmatprep.subr.mxu0 0.0
    %197 = vmatpush1.msra.mxu0 0.0
    %198 = vmatprep.subr.mxu0 0.0
    %199 = vmatpush1.msra.mxu0 0.0
    %200 = vmatprep.subr.mxu0 0.0
    %201 = vmatpush1.msra.mxu0 0.0
    %202 = vmatprep.subr.mxu0 0.0
    %203 = vmatpush1.msra.mxu0 0.0
    %204 = vmatprep.subr.mxu0 0.0
    %205 = vmatpush1.msra.mxu0 0.0
    %206 = vmatprep.subr.mxu0 0.0
    %207 = vmatpush1.msra.mxu0 0.0
    %208 = vmatprep.subr.mxu0 0.0
    %209 = vmatpush1.msra.mxu0 0.0
    %210 = vmatprep.subr.mxu0 0.0
    %211 = vmatpush1.msra.mxu0 0.0
    %212 = vmatprep.mubr.f32.mxu0 0.0
    %213 = vmatmul.mubr.f32.gmra.mrb[0].mxu0 %v146
    %v214 = vpop.f32.mrb[0].mxu0
    %v215 = vadd.f32 0.0, %v214
    %v216 = vpop.f32.mrb[0].mxu0
    %217 = vdwg.mxu0
    %v218 = vld [vmem:[#allocation7] sm:$0xff]
    %v219 = vld [vmem:[#allocation7 + $0x8] sm:$0xff]
    %v220 = vld [vmem:[#allocation7 + $0x10] sm:$0xff]
    %v221 = vld [vmem:[#allocation7 + $0x18] sm:$0xff]
    %v222 = vld [vmem:[#allocation7 + $0x20] sm:$0xff]
    %v223 = vld [vmem:[#allocation7 + $0x28] sm:$0xff]
    %v224 = vld [vmem:[#allocation7 + $0x30] sm:$0xff]
    %v225 = vld [vmem:[#allocation7 + $0x38] sm:$0xff]
    %v226 = vld [vmem:[#allocation7 + $0x40] sm:$0xff]
    %v227 = vld [vmem:[#allocation7 + $0x48] sm:$0xff]
    %v228 = vld [vmem:[#allocation7 + $0x50] sm:$0xff]
    %v229 = vld [vmem:[#allocation7 + $0x58] sm:$0xff]
    %v230 = vld [vmem:[#allocation7 + $0x60] sm:$0xff]
    %v231 = vld [vmem:[#allocation7 + $0x68] sm:$0xff]
    %v232 = vld [vmem:[#allocation7 + $0x70] sm:$0xff]
    %v233 = vld [vmem:[#allocation7 + $0x78] sm:$0xff]
    %v234 = vld [vmem:[%s3] sm:$0x1]
    %v236 = vlaneseq
    %v237 = vshrl.u32 %v236, 7
    %v238 = vsub.s32 0, %v237
    %v239 = vrot.slane %v234, %v238
    %241 = vmatprep.subr.mxu0 0.0
    %242 = vmatpush1.msra.mxu0 %v218
    %243 = vmatprep.subr.mxu0 0.0
    %244 = vmatpush1.msra.mxu0 %v219
    %245 = vmatprep.subr.mxu0 0.0
    %246 = vmatpush1.msra.mxu0 %v220
    %247 = vmatprep.subr.mxu0 0.0
    %248 = vmatpush1.msra.mxu0 %v221
    %249 = vmatprep.subr.mxu0 0.0
    %250 = vmatpush1.msra.mxu0 %v222
    %251 = vmatprep.subr.mxu0 0.0
    %252 = vmatpush1.msra.mxu0 %v223
    %253 = vmatprep.subr.mxu0 0.0
    %254 = vmatpush1.msra.mxu0 %v224
    %255 = vmatprep.subr.mxu0 0.0
    %256 = vmatpush1.msra.mxu0 %v225
    %257 = vmatprep.subr.mxu0 0.0
    %258 = vmatpush1.msra.mxu0 %v226
    %259 = vmatprep.subr.mxu0 0.0
    %260 = vmatpush1.msra.mxu0 %v227
    %261 = vmatprep.subr.mxu0 0.0
    %262 = vmatpush1.msra.mxu0 %v228
    %263 = vmatprep.subr.mxu0 0.0
    %264 = vmatpush1.msra.mxu0 %v229
    %265 = vmatprep.subr.mxu0 0.0
    %266 = vmatpush1.msra.mxu0 %v230
    %267 = vmatprep.subr.mxu0 0.0
    %268 = vmatpush1.msra.mxu0 %v231
    %269 = vmatprep.subr.mxu0 0.0
    %270 = vmatpush1.msra.mxu0 %v232
    %271 = vmatprep.subr.mxu0 0.0
    %272 = vmatpush1.msra.mxu0 %v233
    %273 = vmatprep.subr.mxu0 0.0
    %274 = vmatpush1.msra.mxu0 0.0
    %275 = vmatprep.subr.mxu0 0.0
    %276 = vmatpush1.msra.mxu0 0.0
    %277 = vmatprep.subr.mxu0 0.0
    %278 = vmatpush1.msra.mxu0 0.0
    %279 = vmatprep.subr.mxu0 0.0
    %280 = vmatpush1.msra.mxu0 0.0
    %281 = vmatprep.subr.mxu0 0.0
    %282 = vmatpush1.msra.mxu0 0.0
    %283 = vmatprep.subr.mxu0 0.0
    %284 = vmatpush1.msra.mxu0 0.0
    %285 = vmatprep.subr.mxu0 0.0
    %286 = vmatpush1.msra.mxu0 0.0
    %287 = vmatprep.subr.mxu0 0.0
    %288 = vmatpush1.msra.mxu0 0.0
    %289 = vmatprep.subr.mxu0 0.0
    %290 = vmatpush1.msra.mxu0 0.0
    %291 = vmatprep.subr.mxu0 0.0
    %292 = vmatpush1.msra.mxu0 0.0
    %293 = vmatprep.subr.mxu0 0.0
    %294 = vmatpush1.msra.mxu0 0.0
    %295 = vmatprep.subr.mxu0 0.0
    %296 = vmatpush1.msra.mxu0 0.0
    %297 = vmatprep.subr.mxu0 0.0
    %298 = vmatpush1.msra.mxu0 0.0
    %299 = vmatprep.subr.mxu0 0.0
    %300 = vmatpush1.msra.mxu0 0.0
    %301 = vmatprep.subr.mxu0 0.0
    %302 = vmatpush1.msra.mxu0 0.0
    %303 = vmatprep.subr.mxu0 0.0
    %304 = vmatpush1.msra.mxu0 0.0
    %305 = vmatprep.mubr.f32.mxu0 0.0
    %306 = vmatmul.mubr.f32.gmra.mrb[0].mxu0 %v215
    %v307 = vpop.f32.mrb[0].mxu0
    %v308 = vadd.f32 %v239, %v307
    %v309 = vpop.f32.mrb[0].mxu0
    %310 = vdwg.mxu0
    %v311 = vmax.f32 %v308, 0.0
    %v312 = vld [vmem:[#allocation8] sm:$0xff]
    %v313 = vld [vmem:[#allocation8 + $0x8] sm:$0xff]
    %v314 = vld [vmem:[#allocation8 + $0x10] sm:$0xff]
    %v315 = vld [vmem:[#allocation8 + $0x18] sm:$0xff]
    %v316 = vld [vmem:[#allocation8 + $0x20] sm:$0xff]
    %v317 = vld [vmem:[#allocation8 + $0x28] sm:$0xff]
    %v318 = vld [vmem:[#allocation8 + $0x30] sm:$0xff]
    %v319 = vld [vmem:[#allocation8 + $0x38] sm:$0xff]
    %v320 = vld [vmem:[#allocation8 + $0x40] sm:$0xff]
    %v321 = vld [vmem:[#allocation8 + $0x48] sm:$0xff]
    %v322 = vld [vmem:[#allocation8 + $0x50] sm:$0xff]
    %v323 = vld [vmem:[#allocation8 + $0x58] sm:$0xff]
    %v324 = vld [vmem:[#allocation8 + $0x60] sm:$0xff]
    %v325 = vld [vmem:[#allocation8 + $0x68] sm:$0xff]
    %v326 = vld [vmem:[#allocation8 + $0x70] sm:$0xff]
    %v327 = vld [vmem:[#allocation8 + $0x78] sm:$0xff]
    %v328 = vld [vmem:[%s5] sm:$0x1]
    %v330 = vlaneseq
    %v331 = vshrl.u32 %v330, 7
    %v332 = vsub.s32 0, %v331
    %v333 = vrot.slane %v328, %v332
    %335 = vmatprep.subr.mxu0 0.0
    %336 = vmatpush1.msra.mxu0 %v312
    %337 = vmatprep.subr.mxu0 0.0
    %338 = vmatpush1.msra.mxu0 %v313
    %339 = vmatprep.subr.mxu0 0.0
    %340 = vmatpush1.msra.mxu0 %v314
    %341 = vmatprep.subr.mxu0 0.0
    %342 = vmatpush1.msra.mxu0 %v315
    %343 = vmatprep.subr.mxu0 0.0
    %344 = vmatpush1.msra.mxu0 %v316
    %345 = vmatprep.subr.mxu0 0.0
    %346 = vmatpush1.msra.mxu0 %v317
    %347 = vmatprep.subr.mxu0 0.0
    %348 = vmatpush1.msra.mxu0 %v318
    %349 = vmatprep.subr.mxu0 0.0
    %350 = vmatpush1.msra.mxu0 %v319
    %351 = vmatprep.subr.mxu0 0.0
    %352 = vmatpush1.msra.mxu0 %v320
    %353 = vmatprep.subr.mxu0 0.0
    %354 = vmatpush1.msra.mxu0 %v321
    %355 = vmatprep.subr.mxu0 0.0
    %356 = vmatpush1.msra.mxu0 %v322
    %357 = vmatprep.subr.mxu0 0.0
    %358 = vmatpush1.msra.mxu0 %v323
    %359 = vmatprep.subr.mxu0 0.0
    %360 = vmatpush1.msra.mxu0 %v324
    %361 = vmatprep.subr.mxu0 0.0
    %362 = vmatpush1.msra.mxu0 %v325
    %363 = vmatprep.subr.mxu0 0.0
    %364 = vmatpush1.msra.mxu0 %v326
    %365 = vmatprep.subr.mxu0 0.0
    %366 = vmatpush1.msra.mxu0 %v327
    %367 = vmatprep.subr.mxu0 0.0
    %368 = vmatpush1.msra.mxu0 0.0
    %369 = vmatprep.subr.mxu0 0.0
    %370 = vmatpush1.msra.mxu0 0.0
    %371 = vmatprep.subr.mxu0 0.0
    %372 = vmatpush1.msra.mxu0 0.0
    %373 = vmatprep.subr.mxu0 0.0
    %374 = vmatpush1.msra.mxu0 0.0
    %375 = vmatprep.subr.mxu0 0.0
    %376 = vmatpush1.msra.mxu0 0.0
    %377 = vmatprep.subr.mxu0 0.0
    %378 = vmatpush1.msra.mxu0 0.0
    %379 = vmatprep.subr.mxu0 0.0
    %380 = vmatpush1.msra.mxu0 0.0
    %381 = vmatprep.subr.mxu0 0.0
    %382 = vmatpush1.msra.mxu0 0.0
    %383 = vmatprep.subr.mxu0 0.0
    %384 = vmatpush1.msra.mxu0 0.0
    %385 = vmatprep.subr.mxu0 0.0
    %386 = vmatpush1.msra.mxu0 0.0
    %387 = vmatprep.subr.mxu0 0.0
    %388 = vmatpush1.msra.mxu0 0.0
    %389 = vmatprep.subr.mxu0 0.0
    %390 = vmatpush1.msra.mxu0 0.0
    %391 = vmatprep.subr.mxu0 0.0
    %392 = vmatpush1.msra.mxu0 0.0
    %393 = vmatprep.subr.mxu0 0.0
    %394 = vmatpush1.msra.mxu0 0.0
    %395 = vmatprep.subr.mxu0 0.0
    %396 = vmatpush1.msra.mxu0 0.0
    %397 = vmatprep.subr.mxu0 0.0
    %398 = vmatpush1.msra.mxu0 0.0
    %399 = vmatprep.mubr.f32.mxu0 0.0
    %400 = vmatmul.mubr.f32.gmra.mrb[0].mxu0 %v311
    %v401 = vpop.f32.mrb[0].mxu0
    %v402 = vadd.f32 %v333, %v401
    %v403 = vpop.f32.mrb[0].mxu0
    %404 = vdwg.mxu0
    %405 = vmax.xlane.f32.xlu0 %v402
    %v406 = vpop.xlane.xlu0 %405
    %v407 = vsub.f32 %v402, %v406
    %v408 = vmul.f32 %v407, 1.442695
    %v409 = vpow.pop %v408
    %410 = vadd.xlane.f32.xlu0 %v409
    %v411 = vpop.xlane.xlu0 %410
    %v412 = vlog2.pop %v411
    %v413 = vmul.f32 %v412, 0.6931472
    %v414 = vsub.f32 %v407, %v413
    %415 = vst [vmem:[#allocation10] sm:$0xff] %v414
    // Predicated region
    $region42: #{tpu_custom_call.1} parent=1 // pred_check
      _
    $region43: #{tpu_custom_call.1} parent=1 // pred_check_branch
      %417 = sbr.rel (0) target = $region45
    $region44: #{tpu_custom_call.1} parent=1 // pred_region
      %s419 = ssub.s32 128, 128
      %420 = vsyncadd [#allocation4], %s419
      %s422 = sshll.u32 [#allocation10], 4
      %s423 = int_to_ptr.vmem [resolvable:$true] %s422
      %425 = dma.vmem_to_hbm [thread:$0]  %s423, 128, %s6, [#allocation4]
    $region45: #{tpu_custom_call.1} parent=1 // pred_fallthru
      _
    // Predicated region
    $region46: #{tpu_custom_call.1} parent=1 // pred_check
      _
    $region47: #{tpu_custom_call.1} parent=1 // pred_check_branch
      %427 = sbr.rel (0) target = $region49
    $region48: #{tpu_custom_call.1} parent=1 // pred_region
      %428 = dma.done [#allocation4], 128
    $region49: #{tpu_custom_call.1} parent=1 // pred_fallthru
      _
    %429 = vsyncpa [#allocation3], 1
    %430 = vsyncpa [#allocation6], 1
    %431 = vsyncpa [#allocation9], 1
    %432 = vsyncpa [#allocation4], 1

</llo_original>
